<compile_context>
chip_gen: v6e
topology: v6e:2x2x1
jax: 0.10.0
libtpu: 0.0.40
codegen_flags: <defaults>
</compile_context>

<pallas_src>
import functools
import math

import numpy as np

import jax
import jax.numpy as jnp
from jax.experimental import pallas as pl
from jax.experimental.pallas import tpu as pltpu


# ---------------------------------------------------------------------------
# Kernel
# ---------------------------------------------------------------------------
def _fft2_kernel(x_ref, m_ref, amp_ref, pha_ref, *, hw, runs):
    """One fused real-DFT matmul per grid step.

    x_ref   : (tb, HW) f32 rows = flattened (H, W) slices (source row order).
    m_ref   : (HW, 2*HW) f32 [cos | -sin], H/W fftshift baked into columns;
              unblocked VMEM operand -> single copy, resident across the grid.
    amp/pha : (tb, HW) f32 outputs, rows already in fftshifted B/C order.
    runs    : static tuple of (dst, src, len) contiguous row runs implementing
              the B/C part of fftshift on the *input* rows, or None (identity).
    """
    if runs is None:
        x = x_ref[...]
    else:
        # Static contiguous slices + one concat (cheap sublane copies in VMEM)
        # so both outputs below are single full-block, unmasked stores.
        x = jnp.concatenate(
            [x_ref[src:src + ln, :] for (_dst, src, ln) in runs], axis=0)

    y = jnp.dot(x, m_ref[...], preferred_element_type=jnp.float32)  # (tb, 2*HW)
    re = y[:, :hw]
    im = y[:, hw:]

    # sqrt(0) == 0 exactly -> no zero guard needed.
    # TODO(synk): re*re + im*im can overflow f32 for extreme magnitudes
    # (torch.abs of complex is hypot-style); switch if such inputs are expected.
    amp_ref[...] = jnp.sqrt(re * re + im * im)
    pha_ref[...] = jnp.arctan2(im, re)


# ---------------------------------------------------------------------------
# Constant DFT matrix (cached per (H, W), built with numpy outside the jit)
# ---------------------------------------------------------------------------
@functools.lru_cache(maxsize=None)
def _dft_matrix(H, W):
    """Fused real-DFT matrix (H*W, 2*H*W) = [cos | -sin].

    Column p*W+q of each half corresponds to the *fftshifted* output frequency
    (u, v) = ((p - H//2) mod H, (q - W//2) mod W), i.e. the H/W fftshift is
    baked in.  Phases are reduced mod H / mod W in int64 before scaling.
    """
    h = np.arange(H, dtype=np.int64)
    w = np.arange(W, dtype=np.int64)
    u = (np.arange(H, dtype=np.int64) - H // 2) % H
    v = (np.arange(W, dtype=np.int64) - W // 2) % W
    ph_h = ((h[:, None] * u[None, :]) % H).astype(np.float64) / H   # (H, H)
    ph_w = ((w[:, None] * v[None, :]) % W).astype(np.float64) / W   # (W, W)
    ang = 2.0 * np.pi * (ph_h[:, None, :, None] + ph_w[None, :, None, :])
    cos_m = np.cos(ang).reshape(H * W, H * W)
    sin_m = np.sin(ang).reshape(H * W, H * W)
    # exp(-i*ang): Re = x @ cos ; Im = x @ (-sin)
    m = np.concatenate([cos_m, -sin_m], axis=1).astype(np.float32)
    return jax.device_put(m)


# ---------------------------------------------------------------------------
# Row-permutation (B/C fftshift) helpers
# ---------------------------------------------------------------------------
def _bc_shift_runs(B, C):
    """Contiguous (dst, src, len) runs of the fftshift over flattened (B, C)
    rows: out[p] = in[src(p)]."""
    n = B * C
    src = []
    for p in range(n):
        pb, pc = divmod(p, C)
        src.append(((pb - B // 2) % B) * C + (pc - C // 2) % C)
    runs = []
    start = 0
    while start < n:
        end = start + 1
        while end < n and src[end] == src[end - 1] + 1:
            end += 1
        runs.append((start, src[start], end - start))
        start = end
    return tuple(runs)


def _channel_shift_runs(k, C):
    """Runs (block-relative) for the C-axis fftshift applied to k groups of C
    rows each (the B-axis part is handled by the input index_map)."""
    runs = []
    s = C // 2
    for g in range(k):
        base = g * C
        if s == 0:
            runs.append((base, base, C))
        else:
            runs.append((base, base + s, C - s))
            runs.append((base + (C - s), base, s))
    merged = []
    for dst, src, ln in runs:
        if merged and merged[-1][0] + merged[-1][2] == dst \
                and merged[-1][1] + merged[-1][2] == src:
            d0, s0, l0 = merged[-1]
            merged[-1] = (d0, s0, l0 + ln)
        else:
            merged.append((dst, src, ln))
    return tuple(merged)


def _vmem_capacity_bytes():
    try:
        return int(pltpu.get_tpu_info().vmem_capacity_bytes)
    except Exception:
        return 64 * 1024 * 1024   # conservative default: v7x per-TC VMEM


# ---------------------------------------------------------------------------
# Runner (plan + pallas_call), cached per static shape
# ---------------------------------------------------------------------------
@functools.lru_cache(maxsize=None)
def _make_runner(B, C, H, W):
    HW = H * W
    n_rows = B * C

    cap = _vmem_capacity_bytes()
    m_bytes = HW * (2 * HW) * 4             # single VMEM copy of M (resident)
    per_row = 12 * HW * 4                   # x/amp/pha double-buffered + temps
    budget = cap - cap // 4 - m_bytes       # ~25% headroom for internal scratch
    max_rows = max(1, budget // per_row)
    # TODO(synk): if m_bytes alone blows the budget (large H*W), go separable
    # or frequency-tiled instead of the fused (HW, 2*HW) matrix.

    perm = None            # wrapper-side input row gather (last resort only)
    runs = None            # in-kernel row reorder before the matmul
    src_shift = 0          # block-index shift for the input index_map

    if n_rows <= max_rows and n_rows <= 512:
        # Single grid step: the full (B, C) fftshift is an in-kernel row
        # reorder of the input followed by full-block output stores.
        tb = n_rows
        runs = _bc_shift_runs(B, C)
        if len(runs) == 1 and runs[0][1] == 0:
            runs = None
    else:
        # Multi-step: cap blocks at ~256 rows and keep >= 2 grid steps so the
        # "parallel" axis shards across v7x's two TensorCores.
        target = max(8, min(max_rows, 256, n_rows // 2))
        kmax = math.gcd(B, B // 2) if B > 1 else 1
        k = 0
        for d in range(1, kmax + 1):
            if kmax % d == 0 and d * C <= target:
                k = d
        if k >= 1 and k * C >= 8:
            # B-axis shift = pure block-index arithmetic in the input
            # index_map; C-axis shift = identical per-block in-kernel reorder.
            tb = k * C
            src_shift = (B // 2) // k
            runs = _channel_shift_runs(k, C)
            if len(runs) == 1 and runs[0][1] == 0:
                runs = None
        else:
            # Awkward B/C split: static input row gather in the wrapper
            # (one extra HBM pass; never hit by the common shapes).
            best, best8 = 1, 0
            for d in range(1, n_rows + 1):
                if n_rows % d == 0 and d <= target:
                    best = d
                    if d % 8 == 0:
                        best8 = d
            tb = best8 if best8 else best
            p = np.empty(n_rows, dtype=np.int32)
            for q in range(n_rows):
                pb, pc = divmod(q, C)
                p[q] = ((pb - B // 2) % B) * C + (pc - C // 2) % C
            perm = jnp.asarray(p)

    grid = (n_rows // tb,)
    nb = grid[0]

    if src_shift:
        in_row_map = lambda i: ((i + nb - src_shift) % nb, 0)
    else:
        in_row_map = lambda i: (i, 0)

    in_row_spec = pl.BlockSpec((tb, HW), in_row_map)
    out_row_spec = pl.BlockSpec((tb, HW), lambda i: (i, 0))
    # Whole DFT matrix resident in VMEM, single-buffered (constant operand).
    mat_spec = pl.BlockSpec(memory_space=pltpu.MemorySpace.VMEM)

    kernel = functools.partial(_fft2_kernel, hw=HW, runs=runs)

    need = m_bytes + per_row * tb + (4 << 20)
    vmem_limit = int(min(cap - cap // 4, max(need, 32 << 20)))

    call = pl.pallas_call(
        kernel,
        out_shape=(
            jax.ShapeDtypeStruct((n_rows, HW), jnp.float32),
            jax.ShapeDtypeStruct((n_rows, HW), jnp.float32),
        ),
        grid_spec=pltpu.PrefetchScalarGridSpec(
            num_scalar_prefetch=0,
            grid=grid,
            in_specs=[in_row_spec, mat_spec],
            out_specs=[out_row_spec, out_row_spec],
        ),
        compiler_params=pltpu.CompilerParams(
            dimension_semantics=("parallel",),
            vmem_limit_bytes=vmem_limit,
        ),
    )

    @jax.jit
    def run(dp, m):
        x2 = dp.astype(jnp.float32).reshape(n_rows, HW)
        if perm is not None:
            x2 = jnp.take(x2, perm, axis=0)
        amp2, pha2 = call(x2, m)
        return amp2.reshape(B, C, H, W), pha2.reshape(B, C, H, W)

    return run


def get_frequency(dp):
    """dp: (B, C, H, W) -> (amp, pha) float32, matching
    fftshift(fft2(dp, norm='backward')) over ALL dims, then (abs, angle)."""
    B, C, H, W = dp.shape
    m = _dft_matrix(H, W)
    return _make_runner(B, C, H, W)(dp, m)


if __name__ == "__main__":
    key = jax.random.PRNGKey(0)
    B, C, H, W = 2, 4, 16, 16
    dp = jax.random.normal(key, (B, C, H, W), dtype=jnp.float32)

    amp, pha = get_frequency(dp)
    jax.block_until_ready((amp, pha))
    print("KERNEL_OK")
</pallas_src>

<mosaic_0001>
module attributes {stable_mosaic.version = 11 : i64} {
  func.func @_fft2_kernel(%arg0: i32, %arg1: memref<8x256xf32, #tpu.memory_space<vmem>>, %arg2: memref<256x512xf32, #tpu.memory_space<vmem>>, %arg3: memref<8x256xf32, #tpu.memory_space<vmem>>, %arg4: memref<8x256xf32, #tpu.memory_space<vmem>>) attributes {dimension_semantics = [#tpu.dimension_semantics<parallel>], iteration_bounds = array<i64: 1>, scalar_prefetch = 0 : i64, scratch_operands = 0 : i64, tpu.core_type = #tpu.core_type<tc>, window_params = [{transform_indices = @transform_0, window_bounds = array<i64: 8, 256>}, {pipeline_mode = #tpu.pipeline_mode<synchronous>, transform_indices = @transform_1, window_bounds = array<i64: 256, 512>}, {transform_indices = @transform_2, window_bounds = array<i64: 8, 256>}, {transform_indices = @transform_3, window_bounds = array<i64: 8, 256>}]} {
    %c6 = arith.constant 6 : index
    %c0 = arith.constant 0 : index
    %0 = vector.load %arg1[%c6, %c0] : memref<8x256xf32, #tpu.memory_space<vmem>>, vector<2x256xf32>
    %c4 = arith.constant 4 : index
    %c0_0 = arith.constant 0 : index
    %1 = vector.load %arg1[%c4, %c0_0] : memref<8x256xf32, #tpu.memory_space<vmem>>, vector<2x256xf32>
    %c2 = arith.constant 2 : index
    %c0_1 = arith.constant 0 : index
    %2 = vector.load %arg1[%c2, %c0_1] : memref<8x256xf32, #tpu.memory_space<vmem>>, vector<2x256xf32>
    %c0_2 = arith.constant 0 : index
    %c0_3 = arith.constant 0 : index
    %3 = vector.load %arg1[%c0_2, %c0_3] : memref<8x256xf32, #tpu.memory_space<vmem>>, vector<2x256xf32>
    %4 = tpu.concatenate %0, %1, %2, %3 in 0 : vector<2x256xf32>, vector<2x256xf32>, vector<2x256xf32>, vector<2x256xf32> -> vector<8x256xf32>
    %c0_4 = arith.constant 0 : index
    %c0_5 = arith.constant 0 : index
    %5 = vector.load %arg2[%c0_4, %c0_5] : memref<256x512xf32, #tpu.memory_space<vmem>>, vector<256x512xf32>
    %cst = arith.constant dense<0.000000e+00> : vector<8x512xf32>
    %6 = tpu.matmul %4, %5, %cst {dimension_numbers = #tpu.dot_dimension_numbers<[1], [0], [0], [1], [0, 0, 1, 1], [], []>} : vector<8x256xf32>, vector<256x512xf32>, vector<8x512xf32> -> vector<8x512xf32>
    %7 = vector.extract_strided_slice %6 {offsets = [0, 0], sizes = [8, 256], strides = [1, 1]} : vector<8x512xf32> to vector<8x256xf32>
    %8 = vector.extract_strided_slice %6 {offsets = [0, 256], sizes = [8, 256], strides = [1, 1]} : vector<8x512xf32> to vector<8x256xf32>
    %9 = arith.mulf %7, %7 : vector<8x256xf32>
    %10 = arith.mulf %8, %8 : vector<8x256xf32>
    %11 = arith.addf %9, %10 : vector<8x256xf32>
    %12 = math.sqrt %11 : vector<8x256xf32>
    %c0_6 = arith.constant 0 : index
    %c0_7 = arith.constant 0 : index
    %13 = vector.load %arg3[%c0_6, %c0_7] : memref<8x256xf32, #tpu.memory_space<vmem>>, vector<8x256xf32>
    tpu.vector_store %arg3[%c0_6, %c0_7], %12 {strides = array<i32>} : memref<8x256xf32, #tpu.memory_space<vmem>>, vector<8x256xf32>,
    %14 = math.atan2 %8, %7 : vector<8x256xf32>
    %c0_8 = arith.constant 0 : index
    %c0_9 = arith.constant 0 : index
    %15 = vector.load %arg4[%c0_8, %c0_9] : memref<8x256xf32, #tpu.memory_space<vmem>>, vector<8x256xf32>
    tpu.vector_store %arg4[%c0_8, %c0_9], %14 {strides = array<i32>} : memref<8x256xf32, #tpu.memory_space<vmem>>, vector<8x256xf32>,
    return
  }
  func.func @transform_0(%arg0: i32) -> (i32, i32) {
    %c0_i32 = arith.constant 0 : i32
    %c0_i32_0 = arith.constant 0 : i32
    return %arg0, %c0_i32 : i32, i32
  }
  func.func @transform_1(%arg0: i32) -> (i32, i32) {
    %c0_i32 = arith.constant 0 : i32
    %c0_i32_0 = arith.constant 0 : i32
    %c0_i32_1 = arith.constant 0 : i32
    return %c0_i32, %c0_i32_0 : i32, i32
  }
  func.func @transform_2(%arg0: i32) -> (i32, i32) {
    %c0_i32 = arith.constant 0 : i32
    %c0_i32_0 = arith.constant 0 : i32
    return %arg0, %c0_i32 : i32, i32
  }
  func.func @transform_3(%arg0: i32) -> (i32, i32) {
    %c0_i32 = arith.constant 0 : i32
    %c0_i32_0 = arith.constant 0 : i32
    return %arg0, %c0_i32 : i32, i32
  }
}

</mosaic_0001>

<llo_original>
// kernel: run.1
$region0: #{run.1}
  #allocation0 [shape = 'u32[]', space=smem, size = 0x4, offset = 0x4, fixed_abs, tag = 'smem constant byte address 0x4 - core index']
  #allocation1 [shape = 'u32[144,128]{1,0:T(1,128)}', space=vmem, size = 0x12000, scoped, tag = 'internal scratch']
  %s0 = inlined_call_operand.vmem [shape: f32[8,256], index: 0, kind: input, shape index: {}]
  %s1 = inlined_call_operand.hbm [shape: f32[256,512], index: 1, kind: input, shape index: {}]
  %s2 = inlined_call_operand.vmem [shape: f32[8,256], index: 2, kind: output, shape index: {0}]
  %s3 = inlined_call_operand.vmem [shape: f32[8,256], index: 3, kind: output, shape index: {1}]
  %4 = xla_tuple %s2, %s3
  %s5 = sld [smem:[#allocation0]]
  $region30: #{run.1} parent=0
    _
  %s7 = ssub.s32 1, %s5
  %s8 = scalar_select 0, %s7, %s5
  $region1: #{run.1} parent=0
    #allocation2 [shape = 'u8[524288]{0}', space=vmem, size = 0x80000, scoped, tag = 'input window, operand 1, single buffered']
    #allocation3 [shape = 's32[1]{0}', space=sflag, size = 0x4, scoped, tag = 'scoped memory for run.1']
    %9 = vsyncpa [#allocation3], 0
    // Predicated region
    $region2: #{run.1} parent=1 // pred_check
      _
    $region3: #{run.1} parent=1 // pred_check_branch
      %11 = sbr.rel (0) target = $region5
    $region4: #{run.1} parent=1 // pred_region
      _
    $region5: #{run.1} parent=1 // pred_fallthru
      _
    // Predicated region
    $region6: #{run.1} parent=1 // pred_check
      _
    $region7: #{run.1} parent=1 // pred_check_branch
      %13 = sbr.rel (0) target = $region9
    $region8: #{run.1} parent=1 // pred_region
      %s15 = ssub.s32 16384, 16384
      %16 = vsyncadd [#allocation3], %s15
      %s17 = sshll.u32 [#allocation2], 4
      %s18 = int_to_ptr.vmem [resolvable:$true] %s17
      %23 = dma.hbm_to_vmem [thread:$0]  %s1, 16384, %s18, [#allocation3], 512, 512, 32
    $region9: #{run.1} parent=1 // pred_fallthru
      _
    // Predicated region
    $region10: #{run.1} parent=1 // pred_check
      _
    $region11: #{run.1} parent=1 // pred_check_branch
      %25 = sbr.rel (0) target = $region13
    $region12: #{run.1} parent=1 // pred_region
      %26 = dma.done [#allocation3], 16384
    $region13: #{run.1} parent=1 // pred_fallthru
      _
    %v27 = vld [vmem:[%s0] sm:$0xc0]
    %v28 = vld [vmem:[%s0 + $0x8] sm:$0xc0]
    %v29 = vld [vmem:[%s0] sm:$0x30]
    %v30 = vld [vmem:[%s0 + $0x8] sm:$0x30]
    %v31 = vld [vmem:[%s0] sm:$0xc]
    %v32 = vld [vmem:[%s0 + $0x8] sm:$0xc]
    %v33 = vld [vmem:[%s0] sm:$0x3]
    %v34 = vld [vmem:[%s0 + $0x8] sm:$0x3]
    %v37 = vrot.slane %v27, 6
    %v38 = vrot.slane %v28, 6
    %v43 = vrot.slane %v29, 2
    %v44 = vrot.slane %v30, 2
    %v49 = vrot.slane %v31, 6
    %v50 = vrot.slane %v32, 6
    %v55 = vrot.slane %v33, 2
    %v56 = vrot.slane %v34, 2
    %vm59 = vcmask 1041408
    %v60 = vsel %vm59, %v37, %v43
    %v61 = vsel %vm59, %v38, %v44
    %vm62 = vcmask 1043456
    %v63 = vsel %vm62, %v60, %v49
    %v64 = vsel %vm62, %v61, %v50
    %vm65 = vcmask 1045504
    %v66 = vsel %vm65, %v63, %v55
    %v67 = vsel %vm65, %v64, %v56
    %v68 = vld [vmem:[#allocation2] sm:$0xff]
    %v69 = vld [vmem:[#allocation2 + $0x8] sm:$0xff]
    %v70 = vld [vmem:[#allocation2 + $0x10] sm:$0xff]
    %v71 = vld [vmem:[#allocation2 + $0x18] sm:$0xff]
    %v72 = vld [vmem:[#allocation2 + $0x20] sm:$0xff]
    %v73 = vld [vmem:[#allocation2 + $0x28] sm:$0xff]
    %v74 = vld [vmem:[#allocation2 + $0x30] sm:$0xff]
    %v75 = vld [vmem:[#allocation2 + $0x38] sm:$0xff]
    %v76 = vld [vmem:[#allocation2 + $0x40] sm:$0xff]
    %v77 = vld [vmem:[#allocation2 + $0x48] sm:$0xff]
    %v78 = vld [vmem:[#allocation2 + $0x50] sm:$0xff]
    %v79 = vld [vmem:[#allocation2 + $0x58] sm:$0xff]
    %v80 = vld [vmem:[#allocation2 + $0x60] sm:$0xff]
    %v81 = vld [vmem:[#allocation2 + $0x68] sm:$0xff]
    %v82 = vld [vmem:[#allocation2 + $0x70] sm:$0xff]
    %v83 = vld [vmem:[#allocation2 + $0x78] sm:$0xff]
    %v84 = vld [vmem:[#allocation2 + $0x80] sm:$0xff]
    %v85 = vld [vmem:[#allocation2 + $0x88] sm:$0xff]
    %v86 = vld [vmem:[#allocation2 + $0x90] sm:$0xff]
    %v87 = vld [vmem:[#allocation2 + $0x98] sm:$0xff]
    %v88 = vld [vmem:[#allocation2 + $0xa0] sm:$0xff]
    %v89 = vld [vmem:[#allocation2 + $0xa8] sm:$0xff]
    %v90 = vld [vmem:[#allocation2 + $0xb0] sm:$0xff]
    %v91 = vld [vmem:[#allocation2 + $0xb8] sm:$0xff]
    %v92 = vld [vmem:[#allocation2 + $0xc0] sm:$0xff]
    %v93 = vld [vmem:[#allocation2 + $0xc8] sm:$0xff]
    %v94 = vld [vmem:[#allocation2 + $0xd0] sm:$0xff]
    %v95 = vld [vmem:[#allocation2 + $0xd8] sm:$0xff]
    %v96 = vld [vmem:[#allocation2 + $0xe0] sm:$0xff]
    %v97 = vld [vmem:[#allocation2 + $0xe8] sm:$0xff]
    %v98 = vld [vmem:[#allocation2 + $0xf0] sm:$0xff]
    %v99 = vld [vmem:[#allocation2 + $0xf8] sm:$0xff]
    %v100 = vld [vmem:[#allocation2 + $0x100] sm:$0xff]
    %v101 = vld [vmem:[#allocation2 + $0x108] sm:$0xff]
    %v102 = vld [vmem:[#allocation2 + $0x110] sm:$0xff]
    %v103 = vld [vmem:[#allocation2 + $0x118] sm:$0xff]
    %v104 = vld [vmem:[#allocation2 + $0x120] sm:$0xff]
    %v105 = vld [vmem:[#allocation2 + $0x128] sm:$0xff]
    %v106 = vld [vmem:[#allocation2 + $0x130] sm:$0xff]
    %v107 = vld [vmem:[#allocation2 + $0x138] sm:$0xff]
    %v108 = vld [vmem:[#allocation2 + $0x140] sm:$0xff]
    %v109 = vld [vmem:[#allocation2 + $0x148] sm:$0xff]
    %v110 = vld [vmem:[#allocation2 + $0x150] sm:$0xff]
    %v111 = vld [vmem:[#allocation2 + $0x158] sm:$0xff]
    %v112 = vld [vmem:[#allocation2 + $0x160] sm:$0xff]
    %v113 = vld [vmem:[#allocation2 + $0x168] sm:$0xff]
    %v114 = vld [vmem:[#allocation2 + $0x170] sm:$0xff]
    %v115 = vld [vmem:[#allocation2 + $0x178] sm:$0xff]
    %v116 = vld [vmem:[#allocation2 + $0x180] sm:$0xff]
    %v117 = vld [vmem:[#allocation2 + $0x188] sm:$0xff]
    %v118 = vld [vmem:[#allocation2 + $0x190] sm:$0xff]
    %v119 = vld [vmem:[#allocation2 + $0x198] sm:$0xff]
    %v120 = vld [vmem:[#allocation2 + $0x1a0] sm:$0xff]
    %v121 = vld [vmem:[#allocation2 + $0x1a8] sm:$0xff]
    %v122 = vld [vmem:[#allocation2 + $0x1b0] sm:$0xff]
    %v123 = vld [vmem:[#allocation2 + $0x1b8] sm:$0xff]
    %v124 = vld [vmem:[#allocation2 + $0x1c0] sm:$0xff]
    %v125 = vld [vmem:[#allocation2 + $0x1c8] sm:$0xff]
    %v126 = vld [vmem:[#allocation2 + $0x1d0] sm:$0xff]
    %v127 = vld [vmem:[#allocation2 + $0x1d8] sm:$0xff]
    %v128 = vld [vmem:[#allocation2 + $0x1e0] sm:$0xff]
    %v129 = vld [vmem:[#allocation2 + $0x1e8] sm:$0xff]
    %v130 = vld [vmem:[#allocation2 + $0x1f0] sm:$0xff]
    %v131 = vld [vmem:[#allocation2 + $0x1f8] sm:$0xff]
    %v132 = vld [vmem:[#allocation2 + $0x200] sm:$0xff]
    %v133 = vld [vmem:[#allocation2 + $0x208] sm:$0xff]
    %v134 = vld [vmem:[#allocation2 + $0x210] sm:$0xff]
    %v135 = vld [vmem:[#allocation2 + $0x218] sm:$0xff]
    %v136 = vld [vmem:[#allocation2 + $0x220] sm:$0xff]
    %v137 = vld [vmem:[#allocation2 + $0x228] sm:$0xff]
    %v138 = vld [vmem:[#allocation2 + $0x230] sm:$0xff]
    %v139 = vld [vmem:[#allocation2 + $0x238] sm:$0xff]
    %v140 = vld [vmem:[#allocation2 + $0x240] sm:$0xff]
    %v141 = vld [vmem:[#allocation2 + $0x248] sm:$0xff]
    %v142 = vld [vmem:[#allocation2 + $0x250] sm:$0xff]
    %v143 = vld [vmem:[#allocation2 + $0x258] sm:$0xff]
    %v144 = vld [vmem:[#allocation2 + $0x260] sm:$0xff]
    %v145 = vld [vmem:[#allocation2 + $0x268] sm:$0xff]
    %v146 = vld [vmem:[#allocation2 + $0x270] sm:$0xff]
    %v147 = vld [vmem:[#allocation2 + $0x278] sm:$0xff]
    %v148 = vld [vmem:[#allocation2 + $0x280] sm:$0xff]
    %v149 = vld [vmem:[#allocation2 + $0x288] sm:$0xff]
    %v150 = vld [vmem:[#allocation2 + $0x290] sm:$0xff]
    %v151 = vld [vmem:[#allocation2 + $0x298] sm:$0xff]
    %v152 = vld [vmem:[#allocation2 + $0x2a0] sm:$0xff]
    %v153 = vld [vmem:[#allocation2 + $0x2a8] sm:$0xff]
    %v154 = vld [vmem:[#allocation2 + $0x2b0] sm:$0xff]
    %v155 = vld [vmem:[#allocation2 + $0x2b8] sm:$0xff]
    %v156 = vld [vmem:[#allocation2 + $0x2c0] sm:$0xff]
    %v157 = vld [vmem:[#allocation2 + $0x2c8] sm:$0xff]
    %v158 = vld [vmem:[#allocation2 + $0x2d0] sm:$0xff]
    %v159 = vld [vmem:[#allocation2 + $0x2d8] sm:$0xff]
    %v160 = vld [vmem:[#allocation2 + $0x2e0] sm:$0xff]
    %v161 = vld [vmem:[#allocation2 + $0x2e8] sm:$0xff]
    %v162 = vld [vmem:[#allocation2 + $0x2f0] sm:$0xff]
    %v163 = vld [vmem:[#allocation2 + $0x2f8] sm:$0xff]
    %v164 = vld [vmem:[#allocation2 + $0x300] sm:$0xff]
    %v165 = vld [vmem:[#allocation2 + $0x308] sm:$0xff]
    %v166 = vld [vmem:[#allocation2 + $0x310] sm:$0xff]
    %v167 = vld [vmem:[#allocation2 + $0x318] sm:$0xff]
    %v168 = vld [vmem:[#allocation2 + $0x320] sm:$0xff]
    %v169 = vld [vmem:[#allocation2 + $0x328] sm:$0xff]
    %v170 = vld [vmem:[#allocation2 + $0x330] sm:$0xff]
    %v171 = vld [vmem:[#allocation2 + $0x338] sm:$0xff]
    %v172 = vld [vmem:[#allocation2 + $0x340] sm:$0xff]
    %v173 = vld [vmem:[#allocation2 + $0x348] sm:$0xff]
    %v174 = vld [vmem:[#allocation2 + $0x350] sm:$0xff]
    %v175 = vld [vmem:[#allocation2 + $0x358] sm:$0xff]
    %v176 = vld [vmem:[#allocation2 + $0x360] sm:$0xff]
    %v177 = vld [vmem:[#allocation2 + $0x368] sm:$0xff]
    %v178 = vld [vmem:[#allocation2 + $0x370] sm:$0xff]
    %v179 = vld [vmem:[#allocation2 + $0x378] sm:$0xff]
    %v180 = vld [vmem:[#allocation2 + $0x380] sm:$0xff]
    %v181 = vld [vmem:[#allocation2 + $0x388] sm:$0xff]
    %v182 = vld [vmem:[#allocation2 + $0x390] sm:$0xff]
    %v183 = vld [vmem:[#allocation2 + $0x398] sm:$0xff]
    %v184 = vld [vmem:[#allocation2 + $0x3a0] sm:$0xff]
    %v185 = vld [vmem:[#allocation2 + $0x3a8] sm:$0xff]
    %v186 = vld [vmem:[#allocation2 + $0x3b0] sm:$0xff]
    %v187 = vld [vmem:[#allocation2 + $0x3b8] sm:$0xff]
    %v188 = vld [vmem:[#allocation2 + $0x3c0] sm:$0xff]
    %v189 = vld [vmem:[#allocation2 + $0x3c8] sm:$0xff]
    %v190 = vld [vmem:[#allocation2 + $0x3d0] sm:$0xff]
    %v191 = vld [vmem:[#allocation2 + $0x3d8] sm:$0xff]
    %v192 = vld [vmem:[#allocation2 + $0x3e0] sm:$0xff]
    %v193 = vld [vmem:[#allocation2 + $0x3e8] sm:$0xff]
    %v194 = vld [vmem:[#allocation2 + $0x3f0] sm:$0xff]
    %v195 = vld [vmem:[#allocation2 + $0x3f8] sm:$0xff]
    %196 = vmatprep.subr.mxu0 %v129
    %197 = vmatpush1.msra.mxu0 %v128
    %198 = vmatprep.subr.mxu0 %v125
    %199 = vmatpush1.msra.mxu0 %v124
    %200 = vmatprep.subr.mxu0 %v121
    %201 = vmatpush1.msra.mxu0 %v120
    %202 = vmatprep.subr.mxu0 %v117
    %203 = vmatpush1.msra.mxu0 %v116
    %204 = vmatprep.subr.mxu0 %v113
    %205 = vmatpush1.msra.mxu0 %v112
    %206 = vmatprep.subr.mxu0 %v109
    %207 = vmatpush1.msra.mxu0 %v108
    %208 = vmatprep.subr.mxu0 %v105
    %209 = vmatpush1.msra.mxu0 %v104
    %210 = vmatprep.subr.mxu0 %v101
    %211 = vmatpush1.msra.mxu0 %v100
    %212 = vmatprep.subr.mxu0 %v97
    %213 = vmatpush1.msra.mxu0 %v96
    %214 = vmatprep.subr.mxu0 %v93
    %215 = vmatpush1.msra.mxu0 %v92
    %216 = vmatprep.subr.mxu0 %v89
    %217 = vmatpush1.msra.mxu0 %v88
    %218 = vmatprep.subr.mxu0 %v85
    %219 = vmatpush1.msra.mxu0 %v84
    %220 = vmatprep.subr.mxu0 %v81
    %221 = vmatpush1.msra.mxu0 %v80
    %222 = vmatprep.subr.mxu0 %v77
    %223 = vmatpush1.msra.mxu0 %v76
    %224 = vmatprep.subr.mxu0 %v73
    %225 = vmatpush1.msra.mxu0 %v72
    %226 = vmatprep.subr.mxu0 %v69
    %227 = vmatpush1.msra.mxu0 %v68
    %228 = vmatprep.subr.mxu0 %v193
    %229 = vmatpush2.msra.mxu0 %v192
    %230 = vmatprep.subr.mxu0 %v189
    %231 = vmatpush2.msra.mxu0 %v188
    %232 = vmatprep.subr.mxu0 %v185
    %233 = vmatpush2.msra.mxu0 %v184
    %234 = vmatprep.subr.mxu0 %v181
    %235 = vmatpush2.msra.mxu0 %v180
    %236 = vmatprep.subr.mxu0 %v177
    %237 = vmatpush2.msra.mxu0 %v176
    %238 = vmatprep.subr.mxu0 %v173
    %239 = vmatpush2.msra.mxu0 %v172
    %240 = vmatprep.subr.mxu0 %v169
    %241 = vmatpush2.msra.mxu0 %v168
    %242 = vmatprep.subr.mxu0 %v165
    %243 = vmatpush2.msra.mxu0 %v164
    %244 = vmatprep.subr.mxu0 %v161
    %245 = vmatpush2.msra.mxu0 %v160
    %246 = vmatprep.subr.mxu0 %v157
    %247 = vmatpush2.msra.mxu0 %v156
    %248 = vmatprep.subr.mxu0 %v153
    %249 = vmatpush2.msra.mxu0 %v152
    %250 = vmatprep.subr.mxu0 %v149
    %251 = vmatpush2.msra.mxu0 %v148
    %252 = vmatprep.subr.mxu0 %v145
    %253 = vmatpush2.msra.mxu0 %v144
    %254 = vmatprep.subr.mxu0 %v141
    %255 = vmatpush2.msra.mxu0 %v140
    %256 = vmatprep.subr.mxu0 %v137
    %257 = vmatpush2.msra.mxu0 %v136
    %258 = vmatprep.subr.mxu0 %v133
    %259 = vmatpush2.msra.mxu0 %v132
    %260 = vmatprep.mubr.f32.mxu0 %v67
    %261 = vmatmul.mubr.f32.gmra.mxu0 %v66
    %v262 = vpop.f32.mrf.mxu0
    %v263 = vadd.f32 0.0, %v262
    %v264 = vpop.f32.mrf.mxu0
    %v265 = vadd.f32 0.0, %v264
    %266 = vdwg.mxu0
    %267 = vmatprep.subr.mxu0 %v131
    %268 = vmatpush1.msra.mxu0 %v130
    %269 = vmatprep.subr.mxu0 %v127
    %270 = vmatpush1.msra.mxu0 %v126
    %271 = vmatprep.subr.mxu0 %v123
    %272 = vmatpush1.msra.mxu0 %v122
    %273 = vmatprep.subr.mxu0 %v119
    %274 = vmatpush1.msra.mxu0 %v118
    %275 = vmatprep.subr.mxu0 %v115
    %276 = vmatpush1.msra.mxu0 %v114
    %277 = vmatprep.subr.mxu0 %v111
    %278 = vmatpush1.msra.mxu0 %v110
    %279 = vmatprep.subr.mxu0 %v107
    %280 = vmatpush1.msra.mxu0 %v106
    %281 = vmatprep.subr.mxu0 %v103
    %282 = vmatpush1.msra.mxu0 %v102
    %283 = vmatprep.subr.mxu0 %v99
    %284 = vmatpush1.msra.mxu0 %v98
    %285 = vmatprep.subr.mxu0 %v95
    %286 = vmatpush1.msra.mxu0 %v94
    %287 = vmatprep.subr.mxu0 %v91
    %288 = vmatpush1.msra.mxu0 %v90
    %289 = vmatprep.subr.mxu0 %v87
    %290 = vmatpush1.msra.mxu0 %v86
    %291 = vmatprep.subr.mxu0 %v83
    %292 = vmatpush1.msra.mxu0 %v82
    %293 = vmatprep.subr.mxu0 %v79
    %294 = vmatpush1.msra.mxu0 %v78
    %295 = vmatprep.subr.mxu0 %v75
    %296 = vmatpush1.msra.mxu0 %v74
    %297 = vmatprep.subr.mxu0 %v71
    %298 = vmatpush1.msra.mxu0 %v70
    %299 = vmatprep.subr.mxu0 %v195
    %300 = vmatpush2.msra.mxu0 %v194
    %301 = vmatprep.subr.mxu0 %v191
    %302 = vmatpush2.msra.mxu0 %v190
    %303 = vmatprep.subr.mxu0 %v187
    %304 = vmatpush2.msra.mxu0 %v186
    %305 = vmatprep.subr.mxu0 %v183
    %306 = vmatpush2.msra.mxu0 %v182
    %307 = vmatprep.subr.mxu0 %v179
    %308 = vmatpush2.msra.mxu0 %v178
    %309 = vmatprep.subr.mxu0 %v175
    %310 = vmatpush2.msra.mxu0 %v174
    %311 = vmatprep.subr.mxu0 %v171
    %312 = vmatpush2.msra.mxu0 %v170
    %313 = vmatprep.subr.mxu0 %v167
    %314 = vmatpush2.msra.mxu0 %v166
    %315 = vmatprep.subr.mxu0 %v163
    %316 = vmatpush2.msra.mxu0 %v162
    %317 = vmatprep.subr.mxu0 %v159
    %318 = vmatpush2.msra.mxu0 %v158
    %319 = vmatprep.subr.mxu0 %v155
    %320 = vmatpush2.msra.mxu0 %v154
    %321 = vmatprep.subr.mxu0 %v151
    %322 = vmatpush2.msra.mxu0 %v150
    %323 = vmatprep.subr.mxu0 %v147
    %324 = vmatpush2.msra.mxu0 %v146
    %325 = vmatprep.subr.mxu0 %v143
    %326 = vmatpush2.msra.mxu0 %v142
    %327 = vmatprep.subr.mxu0 %v139
    %328 = vmatpush2.msra.mxu0 %v138
    %329 = vmatprep.subr.mxu0 %v135
    %330 = vmatpush2.msra.mxu0 %v134
    %331 = vmatprep.mubr.f32.mxu0 %v67
    %332 = vmatmul.mubr.f32.gmra.mxu0 %v66
    %v333 = vpop.f32.mrf.mxu0
    %v334 = vadd.f32 0.0, %v333
    %v335 = vpop.f32.mrf.mxu0
    %v336 = vadd.f32 0.0, %v335
    %337 = vdwg.mxu0
    %v338 = vmul.f32 %v263, %v263
    %v339 = vmul.f32 %v265, %v265
    %v340 = vmul.f32 %v334, %v334
    %v341 = vmul.f32 %v336, %v336
    %v342 = vadd.f32 %v338, %v340
    %v343 = vadd.f32 %v339, %v341
    %v344 = vrsqrt.pop %v342
    %v345 = vmul.f32 %v342, %v344
    %vm346 = vcmp.eq.f32.partialorder %v342, inf
    %v347 = vsel %vm346, %v342, %v345
    %vm348 = vcmp.eq.f32.partialorder %v342, 0.0
    %v349 = vand.u32 %v342, 2147483648
    %v350 = vsel %vm348, %v349, %v347
    %v351 = vrsqrt.pop %v343
    %v352 = vmul.f32 %v343, %v351
    %vm353 = vcmp.eq.f32.partialorder %v343, inf
    %v354 = vsel %vm353, %v343, %v352
    %vm355 = vcmp.eq.f32.partialorder %v343, 0.0
    %v356 = vand.u32 %v343, 2147483648
    %v357 = vsel %vm355, %v356, %v354
    %358 = vst [vmem:[%s2] sm:$0xff] %v350
    %359 = vst [vmem:[%s2 + $0x8] sm:$0xff] %v357
    %v360 = vand.u32 2147483647, %v263
    %v361 = vand.u32 2147483647, %v334
    %v362 = vmin.f32 %v360, %v361
    %v363 = vmax.f32 %v360, %v361
    %v364 = vrcp.pop %v363
    %v365 = vmul.f32 %v362, %v364
    %v366 = vmul.f32 %v365, %v365
    %v367 = vmul.f32 0.002785687, %v366
    %v368 = vadd.f32 %v367, -0.015866
    %v369 = vmul.f32 %v368, %v366
    %v370 = vadd.f32 %v369, 0.04247222
    %v371 = vmul.f32 %v370, %v366
    %v372 = vadd.f32 %v371, -0.074975304
    %v373 = vmul.f32 %v372, %v366
    %v374 = vadd.f32 %v373, 0.1064488
    %v375 = vmul.f32 %v374, %v366
    %v376 = vadd.f32 %v375, -0.14207031
    %v377 = vmul.f32 %v376, %v366
    %v378 = vadd.f32 %v377, 0.19993454
    %v379 = vmul.f32 %v378, %v366
    %v380 = vadd.f32 %v379, -0.33333147
    %v381 = vmul.f32 %v380, %v366
    %v382 = vmul.f32 %v381, %v365
    %v383 = vadd.f32 %v382, %v365
    %vm384 = vcmp.gt.f32.partialorder %v361, %v360
    %v385 = vsub.f32 1.5707964, %v383
    %v386 = vsel %vm384, %v385, %v383
    %vm387 = vcmp.lt.f32.partialorder %v263, 0.0
    %v388 = vsub.f32 3.1415927, %v386
    %v389 = vsel %vm387, %v388, %v386
    %vm390 = vcmp.lt.s32.totalorder %v263, 0
    %v391 = vsel %vm390, 3.1415927, 0.0
    %vm392 = vcmp.eq.f32.partialorder %v334, 0.0
    %v393 = vsel %vm392, %v391, %v389
    %vm394 = vcmp.ne.f32.partialorder %v263, %v263
    %vm395 = vcmp.ne.f32.partialorder %v334, %v334
    %vm396 = vmor %vm394, %vm395
    %v397 = vsel %vm396, nan, %v393
    %vm398 = vcmp.lt.f32.partialorder %v263, 0.0
    %v399 = vsel %vm398, 2.3561945, 0.7853982
    %vm400 = vcmp.eq.s32.totalorder %v360, inf
    %vm401 = vcmp.eq.s32.totalorder %v361, inf
    %vm402 = vmand %vm400, %vm401
    %v403 = vsel %vm402, %v399, %v397
    %v404 = vand.u32 2147483647, %v403
    %v405 = vand.u32 %v334, 2147483648
    %v406 = vor.u32 %v404, %v405
    %v407 = vand.u32 2147483647, %v265
    %v408 = vand.u32 2147483647, %v336
    %v409 = vmin.f32 %v407, %v408
    %v410 = vmax.f32 %v407, %v408
    %v411 = vrcp.pop %v410
    %v412 = vmul.f32 %v409, %v411
    %v413 = vmul.f32 %v412, %v412
    %v414 = vmul.f32 0.002785687, %v413
    %v415 = vadd.f32 %v414, -0.015866
    %v416 = vmul.f32 %v415, %v413
    %v417 = vadd.f32 %v416, 0.04247222
    %v418 = vmul.f32 %v417, %v413
    %v419 = vadd.f32 %v418, -0.074975304
    %v420 = vmul.f32 %v419, %v413
    %v421 = vadd.f32 %v420, 0.1064488
    %v422 = vmul.f32 %v421, %v413
    %v423 = vadd.f32 %v422, -0.14207031
    %v424 = vmul.f32 %v423, %v413
    %v425 = vadd.f32 %v424, 0.19993454
    %v426 = vmul.f32 %v425, %v413
    %v427 = vadd.f32 %v426, -0.33333147
    %v428 = vmul.f32 %v427, %v413
    %v429 = vmul.f32 %v428, %v412
    %v430 = vadd.f32 %v429, %v412
    %vm431 = vcmp.gt.f32.partialorder %v408, %v407
    %v432 = vsub.f32 1.5707964, %v430
    %v433 = vsel %vm431, %v432, %v430
    %vm434 = vcmp.lt.f32.partialorder %v265, 0.0
    %v435 = vsub.f32 3.1415927, %v433
    %v436 = vsel %vm434, %v435, %v433
    %vm437 = vcmp.lt.s32.totalorder %v265, 0
    %v438 = vsel %vm437, 3.1415927, 0.0
    %vm439 = vcmp.eq.f32.partialorder %v336, 0.0
    %v440 = vsel %vm439, %v438, %v436
    %vm441 = vcmp.ne.f32.partialorder %v265, %v265
    %vm442 = vcmp.ne.f32.partialorder %v336, %v336
    %vm443 = vmor %vm441, %vm442
    %v444 = vsel %vm443, nan, %v440
    %vm445 = vcmp.lt.f32.partialorder %v265, 0.0
    %v446 = vsel %vm445, 2.3561945, 0.7853982
    %vm447 = vcmp.eq.s32.totalorder %v407, inf
    %vm448 = vcmp.eq.s32.totalorder %v408, inf
    %vm449 = vmand %vm447, %vm448
    %v450 = vsel %vm449, %v446, %v444
    %v451 = vand.u32 2147483647, %v450
    %v452 = vand.u32 %v336, 2147483648
    %v453 = vor.u32 %v451, %v452
    %454 = vst [vmem:[%s3] sm:$0xff] %v406
    %455 = vst [vmem:[%s3 + $0x8] sm:$0xff] %v453
    // Predicated region
    $region14: #{run.1} parent=1 // pred_check
      _
    $region15: #{run.1} parent=1 // pred_check_branch
      %457 = sbr.rel (0) target = $region17
    $region16: #{run.1} parent=1 // pred_region
      _
    $region17: #{run.1} parent=1 // pred_fallthru
      _
    // Predicated region
    $region18: #{run.1} parent=1 // pred_check
      _
    $region19: #{run.1} parent=1 // pred_check_branch
      %459 = sbr.rel (0) target = $region21
    $region20: #{run.1} parent=1 // pred_region
      _
    $region21: #{run.1} parent=1 // pred_fallthru
      _
    // Predicated region
    $region22: #{run.1} parent=1 // pred_check
      _
    $region23: #{run.1} parent=1 // pred_check_branch
      %461 = sbr.rel (0) target = $region25
    $region24: #{run.1} parent=1 // pred_region
      _
    $region25: #{run.1} parent=1 // pred_fallthru
      _
    // Predicated region
    $region26: #{run.1} parent=1 // pred_check
      _
    $region27: #{run.1} parent=1 // pred_check_branch
      %463 = sbr.rel (0) target = $region29
    $region28: #{run.1} parent=1 // pred_region
      _
    $region29: #{run.1} parent=1 // pred_fallthru
      _
    %464 = vsyncpa [#allocation3], 1

</llo_original>
